<compile_context>
chip_gen: v5e
topology: v5e:2x2
jax: 0.10.0
libtpu: 0.0.40
codegen_flags: <defaults>
</compile_context>

<pallas_src>
import functools
import math

import jax
import jax.numpy as jnp
from jax import lax
from jax.experimental import pallas as pl
from jax.experimental.pallas import tpu as pltpu


# --------------------------------------------------------------------------- helpers
_VMEM_LIMIT_CACHE = None


def _vmem_limit():
    """~75% of physical VMEM, capped at 96 MiB (-> ~48 MiB on v7x, 96 MiB on v5e/v6e)."""
    global _VMEM_LIMIT_CACHE
    if _VMEM_LIMIT_CACHE is None:
        try:
            cap = int(pltpu.get_tpu_info().vmem_capacity_bytes)
        except Exception:
            cap = 64 * 1024 * 1024
        _VMEM_LIMIT_CACHE = int(min(cap * 3 // 4, 96 * 1024 * 1024))
    return _VMEM_LIMIT_CACHE


def _divisor_tile(dim, cap):
    if dim <= cap:
        return dim
    for t in range(cap, 0, -1):
        if dim % t == 0:
            return t
    return dim


def _sub_tile(dim, cap):
    """Tile for a sublane-mapped dim: prefer multiples of 8 (or the full dim)."""
    if dim <= cap:
        return dim
    t = _divisor_tile(dim, cap)
    if t % 8 == 0:
        return t
    for t in range(cap - cap % 8, 0, -8):
        if dim % t == 0:
            return t
    return dim


def _lane_tile(dim, cap):
    """Tile for a lane-mapped dim: prefer multiples of 128 (or the full dim)."""
    if dim <= cap:
        return dim
    t = _divisor_tile(dim, cap)
    if t % 128 == 0:
        return t
    for t in range(cap - cap % 128, 0, -128):
        if dim % t == 0:
            return t
    return dim


# --------------------------------------------------------------------------- Linear (+fused LN / mask / residual)
def _matmul_kernel(*refs, has_gamma, has_scale, has_res, ln_eps):
    it = iter(refs)
    a_ref = next(it)
    b_ref = next(it)
    g_ref = next(it) if has_gamma else None
    s_ref = next(it) if has_scale else None
    r_ref = next(it) if has_res else None
    o_ref = next(it)
    acc_ref = next(it)

    @pl.when(pl.program_id(2) == 0)
    def _():
        acc_ref[...] = jnp.zeros_like(acc_ref)

    a = a_ref[...]
    if has_gamma:
        # Fused LayerNorm (scale-only, bias=False) on the A tile; math in f32, then
        # cast back to the weight dtype so the MXU sees native-dtype operands.
        af = a.astype(jnp.float32)
        mu = jnp.mean(af, axis=-1, keepdims=True)
        xc = af - mu
        var = jnp.mean(xc * xc, axis=-1, keepdims=True)
        a = (xc * lax.rsqrt(var + ln_eps)
             * g_ref[...].astype(jnp.float32)).astype(b_ref.dtype)
    acc_ref[...] += jnp.dot(a, b_ref[...], preferred_element_type=jnp.float32)

    @pl.when(pl.program_id(2) == pl.num_programs(2) - 1)
    def _():
        out = acc_ref[...]
        if has_scale:                       # per-row query mask: diag(m) (A W)
            out = out * s_ref[...].astype(jnp.float32)
        if has_res:                         # fused residual add
            out = out + r_ref[...].astype(jnp.float32)
        o_ref[...] = out.astype(o_ref.dtype)


def linear(x, w, *, ln_gamma=None, ln_eps=1e-5, row_scale=None, residual=None,
           tm_cap=512, tn_cap=512, tk_cap=2048):
    """x: (..., K) @ w: (K, N) -> (..., N); optional fused LN / row-scale / residual."""
    lead = x.shape[:-1]
    K = x.shape[-1]
    N = w.shape[-1]
    M = math.prod(lead)
    a = x.reshape(M, K)

    tm = _sub_tile(M, tm_cap)
    tn = _lane_tile(N, tn_cap)
    tk = K if ln_gamma is not None else _lane_tile(K, tk_cap)   # LN needs full C per tile

    in_specs = [pl.BlockSpec((tm, tk), lambda i, j, k: (i, k)),
                pl.BlockSpec((tk, tn), lambda i, j, k: (k, j))]
    args = [a, w]
    if ln_gamma is not None:
        in_specs.append(pl.BlockSpec((1, K), lambda i, j, k: (0, 0)))
        args.append(ln_gamma.reshape(1, K))
    if row_scale is not None:
        in_specs.append(pl.BlockSpec((tm, 1), lambda i, j, k: (i, 0)))
        args.append(row_scale.reshape(M, 1))
    if residual is not None:
        in_specs.append(pl.BlockSpec((tm, tn), lambda i, j, k: (i, j)))
        args.append(residual.reshape(M, N))

    kern = functools.partial(_matmul_kernel,
                             has_gamma=ln_gamma is not None,
                             has_scale=row_scale is not None,
                             has_res=residual is not None,
                             ln_eps=ln_eps)
    out = pl.pallas_call(
        kern,
        out_shape=jax.ShapeDtypeStruct((M, N), x.dtype),
        grid_spec=pltpu.PrefetchScalarGridSpec(
            num_scalar_prefetch=0, grid=(M // tm, N // tn, K // tk),
            in_specs=in_specs,
            out_specs=pl.BlockSpec((tm, tn), lambda i, j, k: (i, j)),
            scratch_shapes=[pltpu.VMEM((tm, tn), jnp.float32)]),
        compiler_params=pltpu.CompilerParams(
            dimension_semantics=("parallel", "parallel", "arbitrary"),
            vmem_limit_bytes=_vmem_limit()),
    )(*args)
    return out.reshape(*lead, N)


# --------------------------------------------------------------------------- Flash attention
def _flash_attn_kernel(*refs, causal, has_key_mask, scale, tq, tkv):
    if has_key_mask:
        q_ref, k_ref, v_ref, km_ref, o_ref, m_sc, l_sc, acc_sc = refs
    else:
        q_ref, k_ref, v_ref, o_ref, m_sc, l_sc, acc_sc = refs

    qi = pl.program_id(1)
    kv = pl.program_id(2)

    @pl.when(kv == 0)
    def _():
        m_sc[...] = jnp.full_like(m_sc[...], -1e30)
        l_sc[...] = jnp.zeros_like(l_sc[...])
        acc_sc[...] = jnp.zeros_like(acc_sc[...])

    def _update():
        q = q_ref[0]                        # (tq, Dh)   native dtype -> MXU-fast in bf16
        k = k_ref[0]                        # (tkv, Dh)
        v = v_ref[0]                        # (tkv, Dh)
        s = lax.dot_general(q, k, (((1,), (1,)), ((), ())),
                            preferred_element_type=jnp.float32) * scale   # (tq, tkv) f32
        valid = None
        if causal:
            row = qi * tq + lax.broadcasted_iota(jnp.int32, s.shape, 0)
            col = kv * tkv + lax.broadcasted_iota(jnp.int32, s.shape, 1)
            valid = col <= row
        if has_key_mask:
            km = km_ref[0]                                    # (tkv, 1)
            kvalid = jnp.reshape(km, (1, km.shape[0])) > 0.0  # (1, tkv)
            kvalid = jnp.broadcast_to(kvalid, s.shape)
            valid = kvalid if valid is None else jnp.logical_and(valid, kvalid)
        if valid is not None:
            s = jnp.where(valid, s, jnp.float32(-1e30))

        m_prev = m_sc[...]
        m_new = jnp.maximum(m_prev, jnp.max(s, axis=-1, keepdims=True))
        alpha = jnp.exp(m_prev - m_new)
        e = jnp.exp(s - m_new)
        if valid is not None:               # guard fully-masked rows (torch -> zeros)
            e = jnp.where(valid, e, jnp.float32(0.0))
        l_sc[...] = alpha * l_sc[...] + jnp.sum(e, axis=-1, keepdims=True)
        acc_sc[...] = alpha * acc_sc[...] + jnp.dot(
            e.astype(v.dtype), v, preferred_element_type=jnp.float32)
        m_sc[...] = m_new

    if causal:
        # Skip KV blocks that lie entirely above the diagonal.
        pl.when(kv * tkv <= qi * tq + (tq - 1))(_update)
    else:
        _update()

    @pl.when(kv == pl.num_programs(2) - 1)
    def _():
        inv = pl.reciprocal(jnp.maximum(l_sc[...], jnp.float32(1e-30)), approx=True)
        o_ref[0] = (acc_sc[...] * inv).astype(o_ref.dtype)


def flash_attention(q, k, v, *, causal, scale, key_mask=None, n_query_heads=1,
                    tq_cap=256, tkv_cap=256):
    """q: (BH, T1, Dh); k,v: (BH, T2, Dh); key_mask: (B, T2) or None (dedup'd per head)."""
    BH, T1, Dh = q.shape
    T2 = k.shape[1]
    tq = _sub_tile(T1, tq_cap)
    tkv = _sub_tile(T2, tkv_cap)

    in_specs = [pl.BlockSpec((1, tq, Dh), lambda b, i, j: (b, i, 0)),
                pl.BlockSpec((1, tkv, Dh), lambda b, i, j: (b, j, 0)),
                pl.BlockSpec((1, tkv, Dh), lambda b, i, j: (b, j, 0))]
    args = [q, k, v]
    if key_mask is not None:
        B = key_mask.shape[0]
        km = key_mask.astype(jnp.float32).reshape(B, T2, 1)    # sublane-mapped mask
        in_specs.append(pl.BlockSpec(
            (1, tkv, 1), lambda b, i, j, H=n_query_heads: (b // H, j, 0)))
        args.append(km)

    kern = functools.partial(_flash_attn_kernel, causal=causal,
                             has_key_mask=key_mask is not None,
                             scale=scale, tq=tq, tkv=tkv)
    return pl.pallas_call(
        kern,
        out_shape=jax.ShapeDtypeStruct((BH, T1, Dh), q.dtype),
        grid_spec=pltpu.PrefetchScalarGridSpec(
            num_scalar_prefetch=0, grid=(BH, T1 // tq, T2 // tkv),
            in_specs=in_specs,
            out_specs=pl.BlockSpec((1, tq, Dh), lambda b, i, j: (b, i, 0)),
            scratch_shapes=[pltpu.VMEM((tq, 1), jnp.float32),
                            pltpu.VMEM((tq, 1), jnp.float32),
                            pltpu.VMEM((tq, Dh), jnp.float32)]),
        compiler_params=pltpu.CompilerParams(
            dimension_semantics=("parallel", "parallel", "arbitrary"),
            vmem_limit_bytes=_vmem_limit()),
    )(*args)


# --------------------------------------------------------------------------- Causal Conv1d (NTC, fused LN/GELU/res/mask)
def _causal_conv_kernel(*refs, K, dilation, tT, halo, fuse_gelu,
                        has_ln, has_res, has_mask, ln_eps):
    it = iter(refs)
    P = (K - 1) * dilation
    halo_ref = next(it) if P > 0 else None
    cur_ref = next(it)
    w_ref = next(it)                         # (K, C_in, tN)
    g_ref = next(it) if has_ln else None
    r_ref = next(it) if has_res else None
    m_ref = next(it) if has_mask else None
    o_ref = next(it)

    cur = cur_ref[0]                                              # (tT, C_in)
    if P > 0:
        # Left halo = last P rows of the 8-row-aligned halo block; zeroing it on the
        # first time tile IS the causal padding (fused into the kernel).
        keep = (pl.program_id(1) > 0).astype(cur.dtype)
        tail = halo_ref[0, halo - P:halo, :] * keep               # (P, C_in)
        window = jnp.concatenate([tail, cur], axis=0)             # (P + tT, C_in)
    else:
        window = cur

    if has_ln:
        wf = window.astype(jnp.float32)
        mu = jnp.mean(wf, axis=-1, keepdims=True)
        wc = wf - mu
        var = jnp.mean(wc * wc, axis=-1, keepdims=True)
        window = (wc * lax.rsqrt(var + ln_eps)
                  * g_ref[...].astype(jnp.float32)).astype(w_ref.dtype)

    tN = w_ref.shape[-1]
    acc = jnp.zeros((tT, tN), jnp.float32)
    for kk in range(K):    # K is small & static -> unrolled, one MXU dot per tap
        acc += jnp.dot(window[kk * dilation:kk * dilation + tT, :], w_ref[kk],
                       preferred_element_type=jnp.float32)
    if fuse_gelu:
        acc = jax.nn.gelu(acc, approximate=True)    # tanh approx == torch GELU('tanh')
    if has_res:
        acc = acc + r_ref[0].astype(jnp.float32)
    if has_mask:
        acc = acc * m_ref[0].astype(jnp.float32)
    o_ref[0] = acc.astype(o_ref.dtype)


def causal_conv1d(x, w_kio, *, kernel_size, dilation=1, fuse_gelu=False,
                  ln_gamma=None, ln_eps=1e-5, residual=None, row_mask=None,
                  tT_cap=256, tN_cap=512):
    """x: (B, T, C_in) NTC; w_kio: (K, C_in, C_out). Causal, stride=1, no bias."""
    B, T, C_in = x.shape
    K = kernel_size
    C_out = w_kio.shape[-1]
    P = (K - 1) * dilation
    tT = _sub_tile(T, tT_cap)
    tN = _lane_tile(C_out, tN_cap)
    assert P <= tT, "time tile must be at least the causal receptive-field halo"

    if P > 0:
        halo = ((P + 7) // 8) * 8            # 8-row aligned halo block
        if not (halo <= tT and tT % halo == 0):
            halo = tT                        # fall back: full previous tile
    else:
        halo = 0

    in_specs = []
    args = []
    if P > 0:
        bp = tT // halo
        in_specs.append(pl.BlockSpec(
            (1, halo, C_in), lambda b, t, n, bp=bp: (b, jnp.maximum(t * bp - 1, 0), 0)))
        args.append(x)
    in_specs.append(pl.BlockSpec((1, tT, C_in), lambda b, t, n: (b, t, 0)))
    args.append(x)
    in_specs.append(pl.BlockSpec((K, C_in, tN), lambda b, t, n: (0, 0, n)))
    args.append(w_kio)
    if ln_gamma is not None:
        in_specs.append(pl.BlockSpec((1, C_in), lambda b, t, n: (0, 0)))
        args.append(ln_gamma.reshape(1, C_in))
    if residual is not None:
        in_specs.append(pl.BlockSpec((1, tT, tN), lambda b, t, n: (b, t, n)))
        args.append(residual)
    if row_mask is not None:
        in_specs.append(pl.BlockSpec((1, tT, 1), lambda b, t, n: (b, t, 0)))
        args.append(row_mask.reshape(B, T, 1))

    kern = functools.partial(_causal_conv_kernel, K=K, dilation=dilation, tT=tT,
                             halo=halo, fuse_gelu=fuse_gelu,
                             has_ln=ln_gamma is not None,
                             has_res=residual is not None,
                             has_mask=row_mask is not None, ln_eps=ln_eps)
    return pl.pallas_call(
        kern,
        out_shape=jax.ShapeDtypeStruct((B, T, C_out), x.dtype),
        grid_spec=pltpu.PrefetchScalarGridSpec(
            num_scalar_prefetch=0, grid=(B, T // tT, C_out // tN),
            in_specs=in_specs,
            out_specs=pl.BlockSpec((1, tT, tN), lambda b, t, n: (b, t, n))),
        compiler_params=pltpu.CompilerParams(
            dimension_semantics=("parallel", "parallel", "parallel"),
            vmem_limit_bytes=_vmem_limit()),
    )(*args)


# --------------------------------------------------------------------------- TransformerLayer
class TransformerLayerPallas:
    """JAX/Pallas equivalent of nemo transformer_2501.TransformerLayer (inference mode)."""

    def __init__(self, d_model, d_ffn, sa_n_heads, kernel_size, p_dropout,
                 has_xattn, xa_d_memory=None, xa_n_heads=None, is_causal=True,
                 apply_norm_to_cond=True, max_length_causal_mask=4096,
                 attn_q_tile=256, attn_kv_tile=256, conv_time_tile=256,
                 conv_cout_tile=512, param_dtype=jnp.float32, *, key):
        assert d_model % sa_n_heads == 0
        # TODO(synk): non-causal (symmetric padding) conv-FF path not implemented.
        assert is_causal
        self.d_model, self.d_ffn = d_model, d_ffn
        self.sa_n_heads = sa_n_heads
        self.kernel_size = kernel_size
        self.p_dropout = p_dropout            # dropout == identity (eval/inference mode)
        self.has_xattn = has_xattn
        self.xa_n_heads = xa_n_heads
        self.is_causal = is_causal
        self.apply_norm_to_cond = apply_norm_to_cond
        self.max_length_causal_mask = max_length_causal_mask  # mask built on the fly
        self.attn_q_tile = attn_q_tile
        self.attn_kv_tile = attn_kv_tile
        self.conv_time_tile = conv_time_tile
        self.conv_cout_tile = conv_cout_tile

        keys = jax.random.split(key, 8)

        def u(k, fan_in, shape):
            b = 1.0 / math.sqrt(fan_in)
            return jax.random.uniform(k, shape, jnp.float32, -b, b)

        pd = param_dtype
        # LayerNorm scales (torch init = ones, bias disabled).  Kept in f32 (LN math f32).
        self.g_norm_self = jnp.ones((d_model,), jnp.float32)
        self.g_norm_ff = jnp.ones((d_model,), jnp.float32)
        # Projections stored (in, out) so x @ W applies directly; bf16-castable.
        self.w_qkv = u(keys[0], d_model, (d_model, 3 * d_model)).astype(pd)
        self.w_o_self = u(keys[1], d_model, (d_model, d_model)).astype(pd)
        if has_xattn:
            assert xa_d_memory is not None and xa_n_heads is not None
            assert d_model % xa_n_heads == 0
            self.g_norm_xq = jnp.ones((d_model,), jnp.float32)
            self.g_norm_mem = jnp.ones((xa_d_memory,), jnp.float32)
            self.w_q_x = u(keys[2], d_model, (d_model, d_model)).astype(pd)
            self.w_kv_x = u(keys[3], xa_d_memory, (xa_d_memory, 2 * d_model)).astype(pd)
            self.w_o_x = u(keys[4], d_model, (d_model, d_model)).astype(pd)
        # Positionwise conv FF (bias=False as in PositionwiseConvFF defaults).
        K = kernel_size
        self.w_ff1_torch = u(keys[5], d_model * K, (d_ffn, d_model, K))   # (C_out, C_in, K)
        self.w_ff2_torch = u(keys[6], d_ffn * K, (d_model, d_ffn, K))
        self.w_ff1_kio = jnp.transpose(self.w_ff1_torch, (2, 1, 0)).astype(pd)  # (K,Cin,Cout)
        self.w_ff2_kio = jnp.transpose(self.w_ff2_torch, (2, 1, 0)).astype(pd)

    def __call__(self, x, x_mask, cond=None, cond_mask=None, attn_prior=None):
        # TODO(synk): attn_prior (log-prior added to scores) not implemented.
        assert attn_prior is None
        B, T, C = x.shape
        H = self.sa_n_heads
        Dh = C // H
        xm = x_mask[..., None].astype(x.dtype)           # (B, T, 1)
        xm_rows = xm.reshape(B * T, 1)
        x = x * xm

        # ---- self attention (norm_self fused into the qkv projection) ---------
        qkv = linear(x, self.w_qkv, ln_gamma=self.g_norm_self).reshape(B, T, 3, H, Dh)
        q = jnp.transpose(qkv[:, :, 0], (0, 2, 1, 3)).reshape(B * H, T, Dh)
        k = jnp.transpose(qkv[:, :, 1], (0, 2, 1, 3)).reshape(B * H, T, Dh)
        v = jnp.transpose(qkv[:, :, 2], (0, 2, 1, 3)).reshape(B * H, T, Dh)
        y = flash_attention(q, k, v, causal=self.is_causal, scale=Dh ** -0.5,
                            tq_cap=self.attn_q_tile, tkv_cap=self.attn_kv_tile)
        y = jnp.transpose(y.reshape(B, H, T, Dh), (0, 2, 1, 3)).reshape(B, T, C)
        # o-projection with the query-row mask and the residual add fused in.
        x = linear(y, self.w_o_self, row_scale=xm_rows, residual=x)

        # ---- cross attention ---------------------------------------------------
        if self.has_xattn and cond is not None:
            Hx = self.xa_n_heads
            Dhx = C // Hx
            T2 = cond.shape[1]
            qx = linear(x, self.w_q_x, ln_gamma=self.g_norm_xq)
            kvx = linear(cond, self.w_kv_x,
                         ln_gamma=self.g_norm_mem if self.apply_norm_to_cond else None)
            qx = jnp.transpose(qx.reshape(B, T, Hx, Dhx), (0, 2, 1, 3)).reshape(B * Hx, T, Dhx)
            kvx = kvx.reshape(B, T2, 2, Hx, Dhx)
            kx = jnp.transpose(kvx[:, :, 0], (0, 2, 1, 3)).reshape(B * Hx, T2, Dhx)
            vx = jnp.transpose(kvx[:, :, 1], (0, 2, 1, 3)).reshape(B * Hx, T2, Dhx)
            yx = flash_attention(qx, kx, vx, causal=False, scale=Dhx ** -0.5,
                                 key_mask=cond_mask, n_query_heads=Hx,
                                 tq_cap=self.attn_q_tile, tkv_cap=self.attn_kv_tile)
            yx = jnp.transpose(yx.reshape(B, Hx, T, Dhx), (0, 2, 1, 3)).reshape(B, T, C)
            x = linear(yx, self.w_o_x, residual=x)

        # ---- positionwise conv FF (NTC, LN+GELU fused; residual+mask fused) ----
        h = causal_conv1d(x, self.w_ff1_kio, kernel_size=self.kernel_size,
                          ln_gamma=self.g_norm_ff, fuse_gelu=True,
                          tT_cap=self.conv_time_tile, tN_cap=self.conv_cout_tile)
        x = causal_conv1d(h, self.w_ff2_kio, kernel_size=self.kernel_size,
                          residual=x, row_mask=xm,
                          tT_cap=self.conv_time_tile, tN_cap=self.conv_cout_tile)

        # TODO(synk): attention probabilities / scores are not returned.
        return {"output": x,
                "attn_probabilities": {"self_attn_probabilities": None,
                                       "cross_attn_probabilities": None}}


# --------------------------------------------------------------------------- pure-JAX reference
def _reference_forward(layer, x, x_mask, cond, cond_mask):
    hp = lax.Precision.HIGHEST
    neg = jnp.float32(-1e30)

    def ln(v, g, eps=1e-5):
        mu = jnp.mean(v, axis=-1, keepdims=True)
        c = v - mu
        var = jnp.mean(c * c, axis=-1, keepdims=True)
        return c / jnp.sqrt(var + eps) * g

    B, T, C = x.shape
    xm = x_mask[..., None].astype(x.dtype)
    h = x * xm

    # self attention
    H = layer.sa_n_heads
    Dh = C // H
    xn = ln(h, layer.g_norm_self)
    qkv = jnp.einsum('btc,cd->btd', xn, layer.w_qkv, precision=hp).reshape(B, T, 3, H, Dh)
    q = jnp.transpose(qkv[:, :, 0], (0, 2, 1, 3))
    k = jnp.transpose(qkv[:, :, 1], (0, 2, 1, 3))
    v = jnp.transpose(qkv[:, :, 2], (0, 2, 1, 3))
    s = jnp.einsum('bhqd,bhkd->bhqk', q, k, precision=hp) * (Dh ** -0.5)
    cm = jnp.tril(jnp.ones((T, T), dtype=bool))
    s = jnp.where(cm[None, None], s, neg)
    p = jax.nn.softmax(s, axis=-1)
    y = jnp.einsum('bhqk,bhkd->bhqd', p, v, precision=hp)
    y = jnp.transpose(y, (0, 2, 1, 3)).reshape(B, T, C)
    y = y * xm
    y = jnp.einsum('btc,cd->btd', y, layer.w_o_self, precision=hp)
    h = h + y

    # cross attention
    if layer.has_xattn and cond is not None:
        Hx = layer.xa_n_heads
        Dhx = C // Hx
        T2 = cond.shape[1]
        xq = ln(h, layer.g_norm_xq)
        mem = ln(cond, layer.g_norm_mem) if layer.apply_norm_to_cond else cond
        q = jnp.einsum('btc,cd->btd', xq, layer.w_q_x, precision=hp).reshape(B, T, Hx, Dhx)
        kv = jnp.einsum('btc,cd->btd', mem, layer.w_kv_x, precision=hp).reshape(B, T2, 2, Hx, Dhx)
        q = jnp.transpose(q, (0, 2, 1, 3))
        k = jnp.transpose(kv[:, :, 0], (0, 2, 1, 3))
        v = jnp.transpose(kv[:, :, 1], (0, 2, 1, 3))
        s = jnp.einsum('bhqd,bhkd->bhqk', q, k, precision=hp) * (Dhx ** -0.5)
        km = cond_mask[:, None, None, :].astype(bool)
        s = jnp.where(km, s, neg)
        e = jnp.exp(s - jnp.max(s, axis=-1, keepdims=True))
        e = jnp.where(km, e, 0.0)
        p = e / jnp.maximum(jnp.sum(e, axis=-1, keepdims=True), 1e-30)
        y = jnp.einsum('bhqk,bhkd->bhqd', p, v, precision=hp)
        y = jnp.transpose(y, (0, 2, 1, 3)).reshape(B, T, C)
        y = jnp.einsum('btc,cd->btd', y, layer.w_o_x, precision=hp)
        h = h + y

    # positionwise conv FF
    def cconv(u, w_torch):
        P = w_torch.shape[-1] - 1
        o = lax.conv_general_dilated(jnp.transpose(u, (0, 2, 1)), w_torch,
                                     window_strides=(1,), padding=((P, 0),),
                                     dimension_numbers=('NCH', 'OIH', 'NCH'),
                                     precision=hp)
        return jnp.transpose(o, (0, 2, 1))

    xn = ln(h, layer.g_norm_ff)
    f = jax.nn.gelu(cconv(xn, layer.w_ff1_torch), approximate=True)
    f = cconv(f, layer.w_ff2_torch)
    h = h + f
    h = h * xm
    return h


if __name__ == "__main__":
    key = jax.random.PRNGKey(0)
    k_param, k_x, k_cond = jax.random.split(key, 3)

    B, T1, T2 = 2, 32, 16
    d_model, d_ffn, sa_heads, xa_heads, d_mem, ksize = 64, 256, 4, 2, 32, 3

    # Small tiles so KV tiling, causal block skipping, the conv halo path, and the
    # conv C_out tiling are all actually exercised at these toy shapes.
    layer = TransformerLayerPallas(
        d_model=d_model, d_ffn=d_ffn, sa_n_heads=sa_heads, kernel_size=ksize,
        p_dropout=0.1, has_xattn=True, xa_d_memory=d_mem, xa_n_heads=xa_heads,
        is_causal=True, apply_norm_to_cond=True,
        attn_q_tile=8, attn_kv_tile=8, conv_time_tile=16, conv_cout_tile=128,
        key=k_param)

    x = jax.random.normal(k_x, (B, T1, d_model), jnp.float32)
    cond = jax.random.normal(k_cond, (B, T2, d_mem), jnp.float32)
    x_mask = jnp.arange(T1)[None, :] < jnp.array([[T1], [27]])
    cond_mask = jnp.arange(T2)[None, :] < jnp.array([[T2], [9]])

    out = layer(x, x_mask, cond=cond, cond_mask=cond_mask)
    y = jax.block_until_ready(out["output"])
    assert y.shape == (B, T1, d_model)
    assert bool(jnp.all(jnp.isfinite(y)))

    y_ref = _reference_forward(layer, x, x_mask, cond, cond_mask)
    err = float(jnp.max(jnp.abs(y - y_ref)))
    assert jnp.allclose(y, y_ref, atol=2e-3, rtol=2e-3), err

    print("KERNEL_OK")
</pallas_src>

<mosaic_0001>
module attributes {stable_mosaic.version = 11 : i64} {
  func.func @_matmul_kernel(%arg0: i32, %arg1: i32, %arg2: i32, %arg3: memref<64x64xf32, #tpu.memory_space<vmem>>, %arg4: memref<64x192xf32, #tpu.memory_space<vmem>>, %arg5: memref<1x64xf32, #tpu.memory_space<vmem>>, %arg6: memref<64x192xf32, #tpu.memory_space<vmem>>, %arg7: memref<64x192xf32, #tpu.memory_space<vmem>>) attributes {dimension_semantics = [#tpu.dimension_semantics<parallel>, #tpu.dimension_semantics<parallel>, #tpu.dimension_semantics<arbitrary>], iteration_bounds = array<i64: 1, 1, 1>, scalar_prefetch = 0 : i64, scratch_operands = 1 : i64, tpu.core_type = #tpu.core_type<tc>, window_params = [{transform_indices = @transform_0, window_bounds = array<i64: 64, 64>}, {transform_indices = @transform_1, window_bounds = array<i64: 64, 192>}, {pipeline_mode = #tpu.pipeline_mode<synchronous>, transform_indices = @transform_2, window_bounds = array<i64: 1, 64>}, {transform_indices = @transform_3, window_bounds = array<i64: 64, 192>}]} {
    %c0_i32 = arith.constant 0 : i32
    %0 = arith.cmpi eq, %arg2, %c0_i32 : i32
    %1 = arith.extui %0 : i1 to i32
    %c0_i32_0 = arith.constant 0 : i32
    %2 = arith.cmpi ne, %1, %c0_i32_0 : i32
    scf.if %2 {
      %cst_17 = arith.constant 0.000000e+00 : f32
      %31 = vector.broadcast %cst_17 : f32 to vector<64x192xf32>
      %c0_18 = arith.constant 0 : index
      %c0_19 = arith.constant 0 : index
      %32 = vector.load %arg7[%c0_18, %c0_19] : memref<64x192xf32, #tpu.memory_space<vmem>>, vector<64x192xf32>
      tpu.vector_store %arg7[%c0_18, %c0_19], %31 {strides = array<i32>} : memref<64x192xf32, #tpu.memory_space<vmem>>, vector<64x192xf32>,
    } else {
    }
    %c0 = arith.constant 0 : index
    %c0_1 = arith.constant 0 : index
    %3 = vector.load %arg3[%c0, %c0_1] : memref<64x64xf32, #tpu.memory_space<vmem>>, vector<64x64xf32>
    %cst = arith.constant dense<0.000000e+00> : vector<64xf32>
    %4 = vector.multi_reduction <add>, %3, %cst [1] : vector<64x64xf32> to vector<64xf32>
    %5 = vector.shape_cast %4 : vector<64xf32> to vector<64x1xf32>
    %cst_2 = arith.constant 6.400000e+01 : f32
    %6 = vector.broadcast %cst_2 : f32 to vector<64x1xf32>
    %7 = arith.divf %5, %6 : vector<64x1xf32>
    %8 = vector.broadcast %7 : vector<64x1xf32> to vector<64x64xf32>
    %9 = arith.subf %3, %8 : vector<64x64xf32>
    %10 = arith.mulf %9, %9 : vector<64x64xf32>
    %cst_3 = arith.constant dense<0.000000e+00> : vector<64xf32>
    %11 = vector.multi_reduction <add>, %10, %cst_3 [1] : vector<64x64xf32> to vector<64xf32>
    %12 = vector.shape_cast %11 : vector<64xf32> to vector<64x1xf32>
    %cst_4 = arith.constant 6.400000e+01 : f32
    %13 = vector.broadcast %cst_4 : f32 to vector<64x1xf32>
    %14 = arith.divf %12, %13 : vector<64x1xf32>
    %cst_5 = arith.constant 9.99999974E-6 : f32
    %15 = vector.broadcast %cst_5 : f32 to vector<64x1xf32>
    %16 = arith.addf %14, %15 : vector<64x1xf32>
    %17 = math.rsqrt %16 : vector<64x1xf32>
    %18 = vector.broadcast %17 : vector<64x1xf32> to vector<64x64xf32>
    %19 = arith.mulf %9, %18 : vector<64x64xf32>
    %c0_6 = arith.constant 0 : index
    %c0_7 = arith.constant 0 : index
    %20 = vector.load %arg5[%c0_6, %c0_7] : memref<1x64xf32, #tpu.memory_space<vmem>>, vector<1x64xf32>
    %21 = vector.broadcast %20 : vector<1x64xf32> to vector<64x64xf32>
    %22 = arith.mulf %19, %21 : vector<64x64xf32>
    %c0_8 = arith.constant 0 : index
    %c0_9 = arith.constant 0 : index
    %23 = vector.load %arg7[%c0_8, %c0_9] : memref<64x192xf32, #tpu.memory_space<vmem>>, vector<64x192xf32>
    %c0_10 = arith.constant 0 : index
    %c0_11 = arith.constant 0 : index
    %24 = vector.load %arg4[%c0_10, %c0_11] : memref<64x192xf32, #tpu.memory_space<vmem>>, vector<64x192xf32>
    %cst_12 = arith.constant dense<0.000000e+00> : vector<64x192xf32>
    %25 = tpu.matmul %22, %24, %cst_12 {dimension_numbers = #tpu.dot_dimension_numbers<[1], [0], [0], [1], [0, 0, 1, 1], [], []>} : vector<64x64xf32>, vector<64x192xf32>, vector<64x192xf32> -> vector<64x192xf32>
    %26 = arith.addf %23, %25 : vector<64x192xf32>
    %c0_13 = arith.constant 0 : index
    %c0_14 = arith.constant 0 : index
    %27 = vector.load %arg7[%c0_13, %c0_14] : memref<64x192xf32, #tpu.memory_space<vmem>>, vector<64x192xf32>
    tpu.vector_store %arg7[%c0_13, %c0_14], %26 {strides = array<i32>} : memref<64x192xf32, #tpu.memory_space<vmem>>, vector<64x192xf32>,
    %c0_i32_15 = arith.constant 0 : i32
    %28 = arith.cmpi eq, %arg2, %c0_i32_15 : i32
    %29 = arith.extui %28 : i1 to i32
    %c0_i32_16 = arith.constant 0 : i32
    %30 = arith.cmpi ne, %29, %c0_i32_16 : i32
    scf.if %30 {
      %c0_17 = arith.constant 0 : index
      %c0_18 = arith.constant 0 : index
      %31 = vector.load %arg7[%c0_17, %c0_18] : memref<64x192xf32, #tpu.memory_space<vmem>>, vector<64x192xf32>
      %c0_19 = arith.constant 0 : index
      %c0_20 = arith.constant 0 : index
      %32 = vector.load %arg6[%c0_19, %c0_20] : memref<64x192xf32, #tpu.memory_space<vmem>>, vector<64x192xf32>
      tpu.vector_store %arg6[%c0_19, %c0_20], %31 {strides = array<i32>} : memref<64x192xf32, #tpu.memory_space<vmem>>, vector<64x192xf32>,
    } else {
    }
    return
  }
  func.func @transform_0(%arg0: i32, %arg1: i32, %arg2: i32) -> (i32, i32) {
    %c0_i32 = arith.constant 0 : i32
    return %arg0, %arg2 : i32, i32
  }
  func.func @transform_1(%arg0: i32, %arg1: i32, %arg2: i32) -> (i32, i32) {
    %c0_i32 = arith.constant 0 : i32
    return %arg2, %arg1 : i32, i32
  }
  func.func @transform_2(%arg0: i32, %arg1: i32, %arg2: i32) -> (i32, i32) {
    %c0_i32 = arith.constant 0 : i32
    %c0_i32_0 = arith.constant 0 : i32
    %c0_i32_1 = arith.constant 0 : i32
    return %c0_i32, %c0_i32_0 : i32, i32
  }
  func.func @transform_3(%arg0: i32, %arg1: i32, %arg2: i32) -> (i32, i32) {
    %c0_i32 = arith.constant 0 : i32
    return %arg0, %arg1 : i32, i32
  }
}

</mosaic_0001>

<llo_original>
// kernel: tpu_custom_call.1
$region0: #{tpu_custom_call.1}
  #allocation0 [shape = 'u32[]', space=smem, size = 0x4, offset = 0x4, fixed_abs, tag = 'smem constant byte address 0x4 - core index']
  #allocation1 [shape = 'u32[72,128]{1,0:T(1,128)}', space=vmem, size = 0x9000, scoped, tag = 'internal scratch']
  #allocation2 [shape = 'f32[64,192]{1,0:T(8,128)}', space=vmem, size = 0x10000, scoped, tag = 'scratch operand']
  %s0 = inlined_call_operand.hbm [shape: f32[64,64], index: 0, kind: input, shape index: {}]
  %s1 = inlined_call_operand.hbm [shape: f32[64,192], index: 1, kind: input, shape index: {}]
  %s2 = inlined_call_operand.vmem [shape: f32[1,64], index: 2, kind: input, shape index: {}]
  %s3 = inlined_call_operand.hbm [shape: f32[64,192], index: 3, kind: output, shape index: {}]
  %s4 = sld [smem:[#allocation0]]
  $region38: #{tpu_custom_call.1} parent=0
    _
  %s6 = ssub.s32 1, %s4
  %s7 = scalar_select 0, %s6, %s4
  $region1: #{tpu_custom_call.1} parent=0
    #allocation3 [shape = 'u8[32768]{0}', space=vmem, size = 0x8000, scoped, tag = 'input window, operand 0, single buffered']
    #allocation4 [shape = 's32[1]{0}', space=sflag, size = 0x4, scoped, tag = 'scoped memory for tpu_custom_call.1']
    #allocation5 [shape = 's32[1]{0}', space=sflag, size = 0x4, scoped, tag = 'scoped memory for tpu_custom_call.1']
    #allocation6 [shape = 'u8[65536]{0}', space=vmem, size = 0x10000, scoped, tag = 'input window, operand 1, single buffered']
    #allocation7 [shape = 's32[1]{0}', space=sflag, size = 0x4, scoped, tag = 'scoped memory for tpu_custom_call.1']
    #allocation8 [shape = 'u8[65536]{0}', space=vmem, size = 0x10000, scoped, tag = 'output window, operand 0, single buffered']
    %8 = vsyncpa [#allocation4], 0
    %9 = vsyncpa [#allocation7], 0
    %10 = vsyncpa [#allocation5], 0
    // Predicated region
    $region2: #{tpu_custom_call.1} parent=1 // pred_check
      _
    $region3: #{tpu_custom_call.1} parent=1 // pred_check_branch
      %12 = sbr.rel (0) target = $region5
    $region4: #{tpu_custom_call.1} parent=1 // pred_region
      %14 = vsyncadd [#allocation4], 0
      %s15 = sshll.u32 %s0, 4
      %s16 = int_to_ptr.hbm [resolvable:$true] %s15
      %s17 = sshll.u32 [#allocation3], 4
      %s18 = int_to_ptr.vmem [resolvable:$true] %s17
      %23 = dma.hbm_to_vmem [thread:$0]  %s16, 1024, %s18, [#allocation4], 128, 128, 8
    $region5: #{tpu_custom_call.1} parent=1 // pred_fallthru
      _
    // Predicated region
    $region6: #{tpu_custom_call.1} parent=1 // pred_check
      _
    $region7: #{tpu_custom_call.1} parent=1 // pred_check_branch
      %25 = sbr.rel (0) target = $region9
    $region8: #{tpu_custom_call.1} parent=1 // pred_region
      %27 = vsyncadd [#allocation7], 0
      %s28 = sshll.u32 %s1, 4
      %s29 = int_to_ptr.hbm [resolvable:$true] %s28
      %s30 = sshll.u32 [#allocation6], 4
      %s31 = int_to_ptr.vmem [resolvable:$true] %s30
      %36 = dma.hbm_to_vmem [thread:$0]  %s29, 2048, %s31, [#allocation7], 256, 256, 16
    $region9: #{tpu_custom_call.1} parent=1 // pred_fallthru
      _
    // Predicated region
    $region10: #{tpu_custom_call.1} parent=1 // pred_check
      _
    $region11: #{tpu_custom_call.1} parent=1 // pred_check_branch
      %38 = sbr.rel (0) target = $region13
    $region12: #{tpu_custom_call.1} parent=1 // pred_region
      _
    $region13: #{tpu_custom_call.1} parent=1 // pred_fallthru
      _
    // Predicated region
    $region14: #{tpu_custom_call.1} parent=1 // pred_check
      _
    $region15: #{tpu_custom_call.1} parent=1 // pred_check_branch
      %40 = sbr.rel (0) target = $region17
    $region16: #{tpu_custom_call.1} parent=1 // pred_region
      %42 = dma.done [#allocation4], 1024
    $region17: #{tpu_custom_call.1} parent=1 // pred_fallthru
      _
    // Predicated region
    $region18: #{tpu_custom_call.1} parent=1 // pred_check
      _
    $region19: #{tpu_custom_call.1} parent=1 // pred_check_branch
      %44 = sbr.rel (0) target = $region21
    $region20: #{tpu_custom_call.1} parent=1 // pred_region
      %46 = dma.done [#allocation7], 2048
    $region21: #{tpu_custom_call.1} parent=1 // pred_fallthru
      _
    %p47 = scmp.eq.s32.totalorder 0, 0
    // Predicated region
    $region22: #{tpu_custom_call.1} parent=1 // pred_check
      %p48 = pneg %p47
    $region23: #{tpu_custom_call.1} parent=1 // pred_check_branch
      %50 = sbr.rel (%p48) target = $region25
    $region24: #{tpu_custom_call.1} parent=1 // pred_region
      %51 = vst [vmem:[#allocation2] sm:$0xff] 0.0
      %vm52 = vcmask 523264
      %53 = vst.msk [vmem:[#allocation2 + $0x8] sm:$0xff] %vm52, 0.0
      %54 = vst [vmem:[#allocation2 + $0x10] sm:$0xff] 0.0
      %55 = vst.msk [vmem:[#allocation2 + $0x18] sm:$0xff] %vm52, 0.0
      %56 = vst [vmem:[#allocation2 + $0x20] sm:$0xff] 0.0
      %57 = vst.msk [vmem:[#allocation2 + $0x28] sm:$0xff] %vm52, 0.0
      %58 = vst [vmem:[#allocation2 + $0x30] sm:$0xff] 0.0
      %59 = vst.msk [vmem:[#allocation2 + $0x38] sm:$0xff] %vm52, 0.0
      %60 = vst [vmem:[#allocation2 + $0x40] sm:$0xff] 0.0
      %61 = vst.msk [vmem:[#allocation2 + $0x48] sm:$0xff] %vm52, 0.0
      %62 = vst [vmem:[#allocation2 + $0x50] sm:$0xff] 0.0
      %63 = vst.msk [vmem:[#allocation2 + $0x58] sm:$0xff] %vm52, 0.0
      %64 = vst [vmem:[#allocation2 + $0x60] sm:$0xff] 0.0
      %65 = vst.msk [vmem:[#allocation2 + $0x68] sm:$0xff] %vm52, 0.0
      %66 = vst [vmem:[#allocation2 + $0x70] sm:$0xff] 0.0
      %67 = vst.msk [vmem:[#allocation2 + $0x78] sm:$0xff] %vm52, 0.0
    $region25: #{tpu_custom_call.1} parent=1 // pred_fallthru
      _
    %v68 = vld [vmem:[#allocation3] sm:$0xff]
    %v69 = vld [vmem:[#allocation3 + $0x8] sm:$0xff]
    %v70 = vld [vmem:[#allocation3 + $0x10] sm:$0xff]
    %v71 = vld [vmem:[#allocation3 + $0x18] sm:$0xff]
    %v72 = vld [vmem:[#allocation3 + $0x20] sm:$0xff]
    %v73 = vld [vmem:[#allocation3 + $0x28] sm:$0xff]
    %v74 = vld [vmem:[#allocation3 + $0x30] sm:$0xff]
    %v75 = vld [vmem:[#allocation3 + $0x38] sm:$0xff]
    %vm76 = vcmask 523264
    %v77 = vsel %vm76, %v68, 0.0
    %78 = vadd.xlane.f32.xlu0 %v77
    %v79 = vpop.xlane.xlu0 %78
    %v80 = vsel %vm76, %v69, 0.0
    %81 = vadd.xlane.f32.xlu0 %v80
    %v82 = vpop.xlane.xlu0 %81
    %v83 = vsel %vm76, %v70, 0.0
    %84 = vadd.xlane.f32.xlu0 %v83
    %v85 = vpop.xlane.xlu0 %84
    %v86 = vsel %vm76, %v71, 0.0
    %87 = vadd.xlane.f32.xlu0 %v86
    %v88 = vpop.xlane.xlu0 %87
    %v89 = vsel %vm76, %v72, 0.0
    %90 = vadd.xlane.f32.xlu0 %v89
    %v91 = vpop.xlane.xlu0 %90
    %v92 = vsel %vm76, %v73, 0.0
    %93 = vadd.xlane.f32.xlu0 %v92
    %v94 = vpop.xlane.xlu0 %93
    %v95 = vsel %vm76, %v74, 0.0
    %96 = vadd.xlane.f32.xlu0 %v95
    %v97 = vpop.xlane.xlu0 %96
    %v98 = vsel %vm76, %v75, 0.0
    %99 = vadd.xlane.f32.xlu0 %v98
    %v100 = vpop.xlane.xlu0 %99
    %v101 = vrcp.pop 64.0
    %v102 = vmul.f32 64.0, %v101
    %v103 = vsub.f32 1.0, %v102
    %v104 = vmul.f32 %v101, %v103
    %v105 = vadd.f32 %v101, %v104
    %vm106 = vweird.f32 %v101
    %v107 = vsel %vm106, %v101, %v105
    %v108 = vmul.f32 %v79, %v107
    %v109 = vmul.f32 %v82, %v107
    %v110 = vmul.f32 %v85, %v107
    %v111 = vmul.f32 %v88, %v107
    %v112 = vmul.f32 %v91, %v107
    %v113 = vmul.f32 %v94, %v107
    %v114 = vmul.f32 %v97, %v107
    %v115 = vmul.f32 %v100, %v107
    %v116 = vsub.f32 %v68, %v108
    %v117 = vsub.f32 %v69, %v109
    %v118 = vsub.f32 %v70, %v110
    %v119 = vsub.f32 %v71, %v111
    %v120 = vsub.f32 %v72, %v112
    %v121 = vsub.f32 %v73, %v113
    %v122 = vsub.f32 %v74, %v114
    %v123 = vsub.f32 %v75, %v115
    %v124 = vmul.f32 %v116, %v116
    %v125 = vmul.f32 %v117, %v117
    %v126 = vmul.f32 %v118, %v118
    %v127 = vmul.f32 %v119, %v119
    %v128 = vmul.f32 %v120, %v120
    %v129 = vmul.f32 %v121, %v121
    %v130 = vmul.f32 %v122, %v122
    %v131 = vmul.f32 %v123, %v123
    %v132 = vsel %vm76, %v124, 0.0
    %133 = vadd.xlane.f32.xlu0 %v132
    %v134 = vpop.xlane.xlu0 %133
    %v135 = vsel %vm76, %v125, 0.0
    %136 = vadd.xlane.f32.xlu0 %v135
    %v137 = vpop.xlane.xlu0 %136
    %v138 = vsel %vm76, %v126, 0.0
    %139 = vadd.xlane.f32.xlu0 %v138
    %v140 = vpop.xlane.xlu0 %139
    %v141 = vsel %vm76, %v127, 0.0
    %142 = vadd.xlane.f32.xlu0 %v141
    %v143 = vpop.xlane.xlu0 %142
    %v144 = vsel %vm76, %v128, 0.0
    %145 = vadd.xlane.f32.xlu0 %v144
    %v146 = vpop.xlane.xlu0 %145
    %v147 = vsel %vm76, %v129, 0.0
    %148 = vadd.xlane.f32.xlu0 %v147
    %v149 = vpop.xlane.xlu0 %148
    %v150 = vsel %vm76, %v130, 0.0
    %151 = vadd.xlane.f32.xlu0 %v150
    %v152 = vpop.xlane.xlu0 %151
    %v153 = vsel %vm76, %v131, 0.0
    %154 = vadd.xlane.f32.xlu0 %v153
    %v155 = vpop.xlane.xlu0 %154
    %v156 = vmul.f32 %v134, %v107
    %v157 = vmul.f32 %v137, %v107
    %v158 = vmul.f32 %v140, %v107
    %v159 = vmul.f32 %v143, %v107
    %v160 = vmul.f32 %v146, %v107
    %v161 = vmul.f32 %v149, %v107
    %v162 = vmul.f32 %v152, %v107
    %v163 = vmul.f32 %v155, %v107
    %v164 = vadd.f32 %v156, 1e-05
    %v165 = vadd.f32 %v157, 1e-05
    %v166 = vadd.f32 %v158, 1e-05
    %v167 = vadd.f32 %v159, 1e-05
    %v168 = vadd.f32 %v160, 1e-05
    %v169 = vadd.f32 %v161, 1e-05
    %v170 = vadd.f32 %v162, 1e-05
    %v171 = vadd.f32 %v163, 1e-05
    %v172 = vrsqrt.pop %v164
    %v173 = vmul.f32 %v172, %v164
    %v174 = vmul.f32 %v173, %v172
    %v175 = vmul.f32 0.5, %v174
    %v176 = vsub.f32 1.5, %v175
    %v177 = vmul.f32 %v172, %v176
    %vm178 = vweird.f32 %v164
    %vm179 = vweird.f32 %v172
    %vm180 = vmor %vm178, %vm179
    %v181 = vsel %vm180, %v172, %v177
    %v182 = vrsqrt.pop %v165
    %v183 = vmul.f32 %v182, %v165
    %v184 = vmul.f32 %v183, %v182
    %v185 = vmul.f32 0.5, %v184
    %v186 = vsub.f32 1.5, %v185
    %v187 = vmul.f32 %v182, %v186
    %vm188 = vweird.f32 %v165
    %vm189 = vweird.f32 %v182
    %vm190 = vmor %vm188, %vm189
    %v191 = vsel %vm190, %v182, %v187
    %v192 = vrsqrt.pop %v166
    %v193 = vmul.f32 %v192, %v166
    %v194 = vmul.f32 %v193, %v192
    %v195 = vmul.f32 0.5, %v194
    %v196 = vsub.f32 1.5, %v195
    %v197 = vmul.f32 %v192, %v196
    %vm198 = vweird.f32 %v166
    %vm199 = vweird.f32 %v192
    %vm200 = vmor %vm198, %vm199
    %v201 = vsel %vm200, %v192, %v197
    %v202 = vrsqrt.pop %v167
    %v203 = vmul.f32 %v202, %v167
    %v204 = vmul.f32 %v203, %v202
    %v205 = vmul.f32 0.5, %v204
    %v206 = vsub.f32 1.5, %v205
    %v207 = vmul.f32 %v202, %v206
    %vm208 = vweird.f32 %v167
    %vm209 = vweird.f32 %v202
    %vm210 = vmor %vm208, %vm209
    %v211 = vsel %vm210, %v202, %v207
    %v212 = vrsqrt.pop %v168
    %v213 = vmul.f32 %v212, %v168
    %v214 = vmul.f32 %v213, %v212
    %v215 = vmul.f32 0.5, %v214
    %v216 = vsub.f32 1.5, %v215
    %v217 = vmul.f32 %v212, %v216
    %vm218 = vweird.f32 %v168
    %vm219 = vweird.f32 %v212
    %vm220 = vmor %vm218, %vm219
    %v221 = vsel %vm220, %v212, %v217
    %v222 = vrsqrt.pop %v169
    %v223 = vmul.f32 %v222, %v169
    %v224 = vmul.f32 %v223, %v222
    %v225 = vmul.f32 0.5, %v224
    %v226 = vsub.f32 1.5, %v225
    %v227 = vmul.f32 %v222, %v226
    %vm228 = vweird.f32 %v169
    %vm229 = vweird.f32 %v222
    %vm230 = vmor %vm228, %vm229
    %v231 = vsel %vm230, %v222, %v227
    %v232 = vrsqrt.pop %v170
    %v233 = vmul.f32 %v232, %v170
    %v234 = vmul.f32 %v233, %v232
    %v235 = vmul.f32 0.5, %v234
    %v236 = vsub.f32 1.5, %v235
    %v237 = vmul.f32 %v232, %v236
    %vm238 = vweird.f32 %v170
    %vm239 = vweird.f32 %v232
    %vm240 = vmor %vm238, %vm239
    %v241 = vsel %vm240, %v232, %v237
    %v242 = vrsqrt.pop %v171
    %v243 = vmul.f32 %v242, %v171
    %v244 = vmul.f32 %v243, %v242
    %v245 = vmul.f32 0.5, %v244
    %v246 = vsub.f32 1.5, %v245
    %v247 = vmul.f32 %v242, %v246
    %vm248 = vweird.f32 %v171
    %vm249 = vweird.f32 %v242
    %vm250 = vmor %vm248, %vm249
    %v251 = vsel %vm250, %v242, %v247
    %v252 = vmul.f32 %v116, %v181
    %v253 = vmul.f32 %v117, %v191
    %v254 = vmul.f32 %v118, %v201
    %v255 = vmul.f32 %v119, %v211
    %v256 = vmul.f32 %v120, %v221
    %v257 = vmul.f32 %v121, %v231
    %v258 = vmul.f32 %v122, %v241
    %v259 = vmul.f32 %v123, %v251
    %v260 = vld [vmem:[%s2] sm:$0x1]
    %v262 = vperm.slane %v260, 0
    %v264 = vmul.f32 %v252, %v262
    %v265 = vmul.f32 %v253, %v262
    %v266 = vmul.f32 %v254, %v262
    %v267 = vmul.f32 %v255, %v262
    %v268 = vmul.f32 %v256, %v262
    %v269 = vmul.f32 %v257, %v262
    %v270 = vmul.f32 %v258, %v262
    %v271 = vmul.f32 %v259, %v262
    %v272 = vld [vmem:[#allocation2] sm:$0xff]
    %v273 = vld [vmem:[#allocation2 + $0x8] sm:$0xff]
    %v274 = vld [vmem:[#allocation2 + $0x10] sm:$0xff]
    %v275 = vld [vmem:[#allocation2 + $0x18] sm:$0xff]
    %v276 = vld [vmem:[#allocation2 + $0x20] sm:$0xff]
    %v277 = vld [vmem:[#allocation2 + $0x28] sm:$0xff]
    %v278 = vld [vmem:[#allocation2 + $0x30] sm:$0xff]
    %v279 = vld [vmem:[#allocation2 + $0x38] sm:$0xff]
    %v280 = vld [vmem:[#allocation2 + $0x40] sm:$0xff]
    %v281 = vld [vmem:[#allocation2 + $0x48] sm:$0xff]
    %v282 = vld [vmem:[#allocation2 + $0x50] sm:$0xff]
    %v283 = vld [vmem:[#allocation2 + $0x58] sm:$0xff]
    %v284 = vld [vmem:[#allocation2 + $0x60] sm:$0xff]
    %v285 = vld [vmem:[#allocation2 + $0x68] sm:$0xff]
    %v286 = vld [vmem:[#allocation2 + $0x70] sm:$0xff]
    %v287 = vld [vmem:[#allocation2 + $0x78] sm:$0xff]
    %v288 = vld [vmem:[#allocation6] sm:$0xff]
    %v289 = vld [vmem:[#allocation6 + $0x8] sm:$0xff]
    %v290 = vld [vmem:[#allocation6 + $0x10] sm:$0xff]
    %v291 = vld [vmem:[#allocation6 + $0x18] sm:$0xff]
    %v292 = vld [vmem:[#allocation6 + $0x20] sm:$0xff]
    %v293 = vld [vmem:[#allocation6 + $0x28] sm:$0xff]
    %v294 = vld [vmem:[#allocation6 + $0x30] sm:$0xff]
    %v295 = vld [vmem:[#allocation6 + $0x38] sm:$0xff]
    %v296 = vld [vmem:[#allocation6 + $0x40] sm:$0xff]
    %v297 = vld [vmem:[#allocation6 + $0x48] sm:$0xff]
    %v298 = vld [vmem:[#allocation6 + $0x50] sm:$0xff]
    %v299 = vld [vmem:[#allocation6 + $0x58] sm:$0xff]
    %v300 = vld [vmem:[#allocation6 + $0x60] sm:$0xff]
    %v301 = vld [vmem:[#allocation6 + $0x68] sm:$0xff]
    %v302 = vld [vmem:[#allocation6 + $0x70] sm:$0xff]
    %v303 = vld [vmem:[#allocation6 + $0x78] sm:$0xff]
    %v305 = vsel %vm76, %v264, 0
    %v308 = vsel %vm76, %v265, 0
    %v311 = vsel %vm76, %v266, 0
    %v314 = vsel %vm76, %v267, 0
    %v317 = vsel %vm76, %v268, 0
    %v320 = vsel %vm76, %v269, 0
    %v323 = vsel %vm76, %v270, 0
    %v326 = vsel %vm76, %v271, 0
    %328 = vmatpush.msra.mxu0 0.0
    %329 = vmatpush.msra.mxu0 0.0
    %330 = vmatpush.msra.mxu0 0.0
    %331 = vmatpush.msra.mxu0 0.0
    %332 = vmatpush.msra.mxu0 0.0
    %333 = vmatpush.msra.mxu0 0.0
    %334 = vmatpush.msra.mxu0 0.0
    %335 = vmatpush.msra.mxu0 0.0
    %336 = vmatpush.msra.mxu0 %v302
    %337 = vmatpush.msra.mxu0 %v300
    %338 = vmatpush.msra.mxu0 %v298
    %339 = vmatpush.msra.mxu0 %v296
    %340 = vmatpush.msra.mxu0 %v294
    %341 = vmatpush.msra.mxu0 %v292
    %342 = vmatpush.msra.mxu0 %v290
    %343 = vmatpush.msra.mxu0 %v288
    %344 = vmatmul.f32.gmra.mxu0 %v305
    %v345 = vpop.f32.mrf.mxu0
    %v346 = vadd.f32 0.0, %v345
    %347 = vmatmul.f32.gmra.mxu0 %v308
    %v348 = vpop.f32.mrf.mxu0
    %v349 = vadd.f32 0.0, %v348
    %350 = vmatmul.f32.gmra.mxu0 %v311
    %v351 = vpop.f32.mrf.mxu0
    %v352 = vadd.f32 0.0, %v351
    %353 = vmatmul.f32.gmra.mxu0 %v314
    %v354 = vpop.f32.mrf.mxu0
    %v355 = vadd.f32 0.0, %v354
    %356 = vmatmul.f32.gmra.mxu0 %v317
    %v357 = vpop.f32.mrf.mxu0
    %v358 = vadd.f32 0.0, %v357
    %359 = vmatmul.f32.gmra.mxu0 %v320
    %v360 = vpop.f32.mrf.mxu0
    %v361 = vadd.f32 0.0, %v360
    %362 = vmatmul.f32.gmra.mxu0 %v323
    %v363 = vpop.f32.mrf.mxu0
    %v364 = vadd.f32 0.0, %v363
    %365 = vmatmul.f32.gmra.mxu0 %v326
    %v366 = vpop.f32.mrf.mxu0
    %v367 = vadd.f32 0.0, %v366
    %368 = vdwg.mxu0
    %369 = vmatpush.msra.mxu0 0.0
    %370 = vmatpush.msra.mxu0 0.0
    %371 = vmatpush.msra.mxu0 0.0
    %372 = vmatpush.msra.mxu0 0.0
    %373 = vmatpush.msra.mxu0 0.0
    %374 = vmatpush.msra.mxu0 0.0
    %375 = vmatpush.msra.mxu0 0.0
    %376 = vmatpush.msra.mxu0 0.0
    %377 = vmatpush.msra.mxu0 %v303
    %378 = vmatpush.msra.mxu0 %v301
    %379 = vmatpush.msra.mxu0 %v299
    %380 = vmatpush.msra.mxu0 %v297
    %381 = vmatpush.msra.mxu0 %v295
    %382 = vmatpush.msra.mxu0 %v293
    %383 = vmatpush.msra.mxu0 %v291
    %384 = vmatpush.msra.mxu0 %v289
    %385 = vmatmul.f32.gmra.mxu0 %v305
    %v386 = vpop.f32.mrf.mxu0
    %v387 = vadd.f32 0.0, %v386
    %388 = vmatmul.f32.gmra.mxu0 %v308
    %v389 = vpop.f32.mrf.mxu0
    %v390 = vadd.f32 0.0, %v389
    %391 = vmatmul.f32.gmra.mxu0 %v311
    %v392 = vpop.f32.mrf.mxu0
    %v393 = vadd.f32 0.0, %v392
    %394 = vmatmul.f32.gmra.mxu0 %v314
    %v395 = vpop.f32.mrf.mxu0
    %v396 = vadd.f32 0.0, %v395
    %397 = vmatmul.f32.gmra.mxu0 %v317
    %v398 = vpop.f32.mrf.mxu0
    %v399 = vadd.f32 0.0, %v398
    %400 = vmatmul.f32.gmra.mxu0 %v320
    %v401 = vpop.f32.mrf.mxu0
    %v402 = vadd.f32 0.0, %v401
    %403 = vmatmul.f32.gmra.mxu0 %v323
    %v404 = vpop.f32.mrf.mxu0
    %v405 = vadd.f32 0.0, %v404
    %406 = vmatmul.f32.gmra.mxu0 %v326
    %v407 = vpop.f32.mrf.mxu0
    %v408 = vadd.f32 0.0, %v407
    %409 = vdwg.mxu0
    %v410 = vadd.f32 %v272, %v346
    %v411 = vadd.f32 %v273, %v387
    %v412 = vadd.f32 %v274, %v349
    %v413 = vadd.f32 %v275, %v390
    %v414 = vadd.f32 %v276, %v352
    %v415 = vadd.f32 %v277, %v393
    %v416 = vadd.f32 %v278, %v355
    %v417 = vadd.f32 %v279, %v396
    %v418 = vadd.f32 %v280, %v358
    %v419 = vadd.f32 %v281, %v399
    %v420 = vadd.f32 %v282, %v361
    %v421 = vadd.f32 %v283, %v402
    %v422 = vadd.f32 %v284, %v364
    %v423 = vadd.f32 %v285, %v405
    %v424 = vadd.f32 %v286, %v367
    %v425 = vadd.f32 %v287, %v408
    %426 = vst [vmem:[#allocation2] sm:$0xff] %v410
    %427 = vst.msk [vmem:[#allocation2 + $0x8] sm:$0xff] %vm76, %v411
    %428 = vst [vmem:[#allocation2 + $0x10] sm:$0xff] %v412
    %429 = vst.msk [vmem:[#allocation2 + $0x18] sm:$0xff] %vm76, %v413
    %430 = vst [vmem:[#allocation2 + $0x20] sm:$0xff] %v414
    %431 = vst.msk [vmem:[#allocation2 + $0x28] sm:$0xff] %vm76, %v415
    %432 = vst [vmem:[#allocation2 + $0x30] sm:$0xff] %v416
    %433 = vst.msk [vmem:[#allocation2 + $0x38] sm:$0xff] %vm76, %v417
    %434 = vst [vmem:[#allocation2 + $0x40] sm:$0xff] %v418
    %435 = vst.msk [vmem:[#allocation2 + $0x48] sm:$0xff] %vm76, %v419
    %436 = vst [vmem:[#allocation2 + $0x50] sm:$0xff] %v420
    %437 = vst.msk [vmem:[#allocation2 + $0x58] sm:$0xff] %vm76, %v421
    %438 = vst [vmem:[#allocation2 + $0x60] sm:$0xff] %v422
    %439 = vst.msk [vmem:[#allocation2 + $0x68] sm:$0xff] %vm76, %v423
    %440 = vst [vmem:[#allocation2 + $0x70] sm:$0xff] %v424
    %441 = vst.msk [vmem:[#allocation2 + $0x78] sm:$0xff] %vm76, %v425
    // Predicated region
    $region26: #{tpu_custom_call.1} parent=1 // pred_check
      %p442 = pneg %p47
    $region27: #{tpu_custom_call.1} parent=1 // pred_check_branch
      %444 = sbr.rel (%p442) target = $region29
    $region28: #{tpu_custom_call.1} parent=1 // pred_region
      %v445 = vld [vmem:[#allocation2] sm:$0xff]
      %v446 = vld [vmem:[#allocation2 + $0x8] sm:$0xff]
      %v447 = vld [vmem:[#allocation2 + $0x10] sm:$0xff]
      %v448 = vld [vmem:[#allocation2 + $0x18] sm:$0xff]
      %v449 = vld [vmem:[#allocation2 + $0x20] sm:$0xff]
      %v450 = vld [vmem:[#allocation2 + $0x28] sm:$0xff]
      %v451 = vld [vmem:[#allocation2 + $0x30] sm:$0xff]
      %v452 = vld [vmem:[#allocation2 + $0x38] sm:$0xff]
      %v453 = vld [vmem:[#allocation2 + $0x40] sm:$0xff]
      %v454 = vld [vmem:[#allocation2 + $0x48] sm:$0xff]
      %v455 = vld [vmem:[#allocation2 + $0x50] sm:$0xff]
      %v456 = vld [vmem:[#allocation2 + $0x58] sm:$0xff]
      %v457 = vld [vmem:[#allocation2 + $0x60] sm:$0xff]
      %v458 = vld [vmem:[#allocation2 + $0x68] sm:$0xff]
      %v459 = vld [vmem:[#allocation2 + $0x70] sm:$0xff]
      %v460 = vld [vmem:[#allocation2 + $0x78] sm:$0xff]
      %461 = vst [vmem:[#allocation8] sm:$0xff] %v445
      %462 = vst.msk [vmem:[#allocation8 + $0x8] sm:$0xff] %vm76, %v446
      %463 = vst [vmem:[#allocation8 + $0x10] sm:$0xff] %v447
      %464 = vst.msk [vmem:[#allocation8 + $0x18] sm:$0xff] %vm76, %v448
      %465 = vst [vmem:[#allocation8 + $0x20] sm:$0xff] %v449
      %466 = vst.msk [vmem:[#allocation8 + $0x28] sm:$0xff] %vm76, %v450
      %467 = vst [vmem:[#allocation8 + $0x30] sm:$0xff] %v451
      %468 = vst.msk [vmem:[#allocation8 + $0x38] sm:$0xff] %vm76, %v452
      %469 = vst [vmem:[#allocation8 + $0x40] sm:$0xff] %v453
      %470 = vst.msk [vmem:[#allocation8 + $0x48] sm:$0xff] %vm76, %v454
      %471 = vst [vmem:[#allocation8 + $0x50] sm:$0xff] %v455
      %472 = vst.msk [vmem:[#allocation8 + $0x58] sm:$0xff] %vm76, %v456
      %473 = vst [vmem:[#allocation8 + $0x60] sm:$0xff] %v457
      %474 = vst.msk [vmem:[#allocation8 + $0x68] sm:$0xff] %vm76, %v458
      %475 = vst [vmem:[#allocation8 + $0x70] sm:$0xff] %v459
      %476 = vst.msk [vmem:[#allocation8 + $0x78] sm:$0xff] %vm76, %v460
    $region29: #{tpu_custom_call.1} parent=1 // pred_fallthru
      _
    // Predicated region
    $region30: #{tpu_custom_call.1} parent=1 // pred_check
      _
    $region31: #{tpu_custom_call.1} parent=1 // pred_check_branch
      %478 = sbr.rel (0) target = $region33
    $region32: #{tpu_custom_call.1} parent=1 // pred_region
      %480 = vsyncadd [#allocation5], 0
      %s481 = sshll.u32 [#allocation8], 4
      %s482 = int_to_ptr.vmem [resolvable:$true] %s481
      %s483 = sshll.u32 %s3, 4
      %s484 = int_to_ptr.hbm [resolvable:$true] %s483
      %489 = dma.vmem_to_hbm [thread:$0]  %s482, 2048, %s484, [#allocation5], 256, 256, 16
    $region33: #{tpu_custom_call.1} parent=1 // pred_fallthru
      _
    // Predicated region
    $region34: #{tpu_custom_call.1} parent=1 // pred_check
      _
    $region35: #{tpu_custom_call.1} parent=1 // pred_check_branch
      %491 = sbr.rel (0) target = $region37
    $region36: #{tpu_custom_call.1} parent=1 // pred_region
      %493 = dma.done [#allocation5], 2048
    $region37: #{tpu_custom_call.1} parent=1 // pred_fallthru
      _
    %494 = vsyncpa [#allocation4], 1
    %495 = vsyncpa [#allocation7], 1
    %496 = vsyncpa [#allocation5], 1

</llo_original>
